<compile_context>
chip_gen: v5e
topology: v5e:2x2
jax: 0.10.0
libtpu: 0.0.40
codegen_flags: <defaults>
</compile_context>

<pallas_src>
import math

import jax
import jax.numpy as jnp
from jax import lax
from jax.experimental import pallas as pl
from jax.experimental.pallas import tpu as pltpu


# ----------------------------------------------------------------------------
# Synthetic CLRS-style spec machinery (Stage / Location / Type / SPECS).
# ----------------------------------------------------------------------------
class Stage:
    INPUT = "input"
    HINT = "hint"
    OUTPUT = "output"


class Location:
    NODE = "node"
    EDGE = "edge"
    GRAPH = "graph"


class Type:
    SCALAR = "scalar"
    CATEGORICAL = "categorical"
    MASK = "mask"
    POINTER = "pointer"


ALGO = "toy_algo"

SPECS = {
    ALGO: {
        "pos":    (Stage.INPUT, Location.NODE,  Type.SCALAR),
        "key":    (Stage.INPUT, Location.NODE,  Type.CATEGORICAL),
        "pi":     (Stage.INPUT, Location.NODE,  Type.POINTER),
        "A":      (Stage.INPUT, Location.EDGE,  Type.MASK),
        "s":      (Stage.INPUT, Location.GRAPH, Type.SCALAR),
        "h_pos":  (Stage.HINT,  Location.NODE,  Type.SCALAR),
        "out_pi": (Stage.OUTPUT, Location.NODE, Type.POINTER),   # skipped (OUTPUT)
    }
}

CATEGORIES_DIMENSIONS = {ALGO: {"key": 4}}


# ----------------------------------------------------------------------------
# Small helpers
# ----------------------------------------------------------------------------
def _round_up(x, m):
    return (x + m - 1) // m * m


def _f32(x):
    return x if (hasattr(x, "dtype") and x.dtype == jnp.float32) else jnp.asarray(x, jnp.float32)


def _largest_divisor_leq(x, cap):
    cap = max(1, min(x, cap))
    for d in range(cap, 0, -1):
        if x % d == 0:
            return d
    return 1


def _vmem_capacity_bytes():
    try:
        info = pltpu.get_tpu_info()
        cap = getattr(info, "vmem_capacity_bytes", None)
        if cap:
            return int(cap)
    except Exception:
        pass
    return 64 * 1024 * 1024   # conservative: v7x per-TC VMEM


# ----------------------------------------------------------------------------
# Fused dense linear:  out = X @ W + b   (node / graph destination groups)
# ----------------------------------------------------------------------------
def _make_linear_kernel(cr, use_dot):
    def kernel(x_ref, w_ref, b_ref, o_ref):
        w = w_ref[...]                                   # (Kp, Hp)  hoisted
        b = b_ref[...]                                   # (1, Hp)   hoisted
        n_chunks = o_ref.shape[0] // cr

        @pl.loop(0, n_chunks)
        def _(i):
            rs = pl.multiple_of(i * cr, cr)
            xc = x_ref[pl.ds(rs, cr), :]                 # (cr, Kp)
            if use_dot:
                # MXU path; bias folded into the epilogue, single store.
                res = jnp.dot(xc, w, preferred_element_type=jnp.float32) + b
            else:
                # Degenerate K == 1: one broadcast multiply on the VPU.
                res = xc[:, 0:1] * w[0:1, :] + b
            o_ref[pl.ds(rs, cr), :] = res.astype(o_ref.dtype)

    return kernel


def pallas_linear(x, w, b):
    """Apply Linear(D -> H) over the last axis of x, any leading shape."""
    d_in, hidden = w.shape
    lead = x.shape[:-1]
    m = int(math.prod(lead)) if lead else 1
    x2 = _f32(x.reshape(m, d_in))
    w = _f32(w)
    b = _f32(b)

    # Lane-dense output: pad H to a multiple of 128 (unmasked vst).
    hp = _round_up(hidden, 128)
    if hp != hidden:
        w = jnp.pad(w, ((0, 0), (0, hp - hidden)))
        b = jnp.pad(b, (0, hp - hidden))
    b2 = b.reshape(1, hp)

    # MXU for any K >= 2 (reviewer request); pad K to a multiple of 8 so the
    # contraction is sublane-aligned.  Zero padding is exact.
    use_dot = d_in >= 2
    kp = d_in
    if use_dot:
        kp = _round_up(d_in, 8)
        if kp != d_in:
            x2 = jnp.pad(x2, ((0, 0), (0, kp - d_in)))
            w = jnp.pad(w, ((0, kp - d_in), (0, 0)))

    # Large row tiles (amortize ~0.35us/step); pad M to the tile.
    tm_cap = max(8, min(2048, (2 * 1024 * 1024) // (hp * 4)))
    tm_cap = (tm_cap // 8) * 8
    if m <= tm_cap:
        tm, m_pad = m, m
    else:
        tm = tm_cap
        m_pad = _round_up(m, tm)
        x2 = jnp.pad(x2, ((0, m_pad - m), (0, 0)))
    # In-kernel row chunk so the live matmul result stays in registers.
    cr = _largest_divisor_leq(tm, 256)

    out = pl.pallas_call(
        _make_linear_kernel(cr, use_dot),
        out_shape=jax.ShapeDtypeStruct((m_pad, hp), jnp.float32),
        grid_spec=pltpu.PrefetchScalarGridSpec(
            num_scalar_prefetch=0,
            grid=(m_pad // tm,),
            in_specs=[pl.BlockSpec((tm, kp), lambda i: (i, 0)),
                      pl.BlockSpec((kp, hp), lambda i: (0, 0)),
                      pl.BlockSpec((1, hp), lambda i: (0, 0))],
            out_specs=pl.BlockSpec((tm, hp), lambda i: (i, 0)),
        ),
        compiler_params=pltpu.CompilerParams(dimension_semantics=("parallel",)),
    )(x2, w, b2)

    if m_pad != m:
        out = out[:m]
    if hp != hidden:
        out = out[:, :hidden]
    return out.reshape(lead + (hidden,))


# ----------------------------------------------------------------------------
# Fused edge-hidden + adjacency kernel
# ----------------------------------------------------------------------------
def _make_edge_kernel(n, h, tn, cr, thresholds, num_ptr):
    """Spec-static fused kernel.

    thresholds: one entry per dense edge channel; None => no adjacency term,
                float t => adjacency contribution ((x + x^T) > t).
    num_ptr:    number of hard NODE/POINTER features; their one-hot (and its
                transpose) is generated in-kernel from the raw indices.

    The (cr, n, h) chunk accumulator is kept in vector registers (cr is picked
    so the chunk is ~16 vregs); every feature is accumulated in-register and
    each output element is stored exactly once.  A flat (tn*n, K) MXU operand
    was rejected: with K (#features) << 128 it is lane-sparse (~16x vreg/VMEM
    inflation), so the register-chunked VPU accumulation is the way to reach
    "one pass + one store" here.  The MXU stays free for the node/graph linears.
    """
    d_e = len(thresholds)
    n_thr = sum(1 for t in thresholds if t is not None)
    n_chunks = tn // cr

    def kernel(*refs):
        idx = 0
        dense_refs = refs[idx:idx + d_e]; idx += d_e
        denseT_refs = refs[idx:idx + n_thr]; idx += n_thr
        ptr_rows_ref = ptr_cols_ref = None
        if num_ptr:
            ptr_rows_ref = refs[idx]; ptr_cols_ref = refs[idx + 1]; idx += 2
        w_e_ref = None
        if d_e:
            w_e_ref = refs[idx]; idx += 1
        w_p_ref = None
        if num_ptr:
            w_p_ref = refs[idx]; idx += 1
        b_ref = refs[idx]; idx += 1
        edge_ref, adj_ref = refs[idx], refs[idx + 1]

        i0 = pl.program_id(1) * tn                       # global row base

        # ---- hoisted invariants (read once per grid step) -------------------
        bias_row = b_ref[...].reshape(1, 1, h)           # (1, 1, h)
        w_e_rows = []
        if d_e:
            w_e = w_e_ref[...]                           # (d_e, h)
            w_e_rows = [w_e[d:d + 1, :].reshape(1, 1, h) for d in range(d_e)]
        w_p_rows = []
        pc_all = None
        if num_ptr:
            w_p = w_p_ref[...]                           # (P, h)
            w_p_rows = [w_p[p:p + 1, :].reshape(1, 1, h) for p in range(num_ptr)]
            pc_all = ptr_cols_ref[0]                     # (P, n) int32

        col = lax.broadcasted_iota(jnp.int32, (cr, n), 1)
        row_local = lax.broadcasted_iota(jnp.int32, (cr, n), 0)

        # ---- register-resident chunk loop -----------------------------------
        @pl.loop(0, n_chunks)
        def _(ci):
            rs = pl.multiple_of(ci * cr, cr)
            rows_global = row_local + (i0 + rs)

            # Bias folded into the register init: no separate zero/bias pass.
            acc = jnp.zeros((cr, n, h), jnp.float32) + bias_row
            adj = rows_global == col                     # identity diagonal

            t_i = 0
            for d in range(d_e):
                xc = dense_refs[d][0, pl.ds(rs, cr), :]          # (cr, n)
                acc = acc + xc[:, :, None] * w_e_rows[d]
                if thresholds[d] is not None:
                    xtc = denseT_refs[t_i][0, pl.ds(rs, cr), :]  # rows of x^T
                    adj = adj | ((xc + xtc) > thresholds[d])
                    t_i += 1

            if num_ptr:
                prc = ptr_rows_ref[0, pl.ds(rs, cr), :]          # (cr, P) int32
                for p in range(num_ptr):
                    oh = prc[:, p:p + 1] == col                  # one-hot rows
                    oht = pc_all[p:p + 1, :] == rows_global      # one-hot^T rows
                    acc = acc + (oh.astype(jnp.float32)[:, :, None]
                                 * w_p_rows[p])
                    adj = adj | oh | oht

            # Single store per output element.
            edge_ref[0, pl.ds(rs, cr)] = acc.astype(edge_ref.dtype)
            adj_ref[0, pl.ds(rs, cr)] = adj.astype(jnp.float32)

    return kernel


def _edge_row_tile(n, h, batch, vmem_cap):
    """Row tile for the (1, tn, n, h) f32 output block.

    Target ~vmem_cap/16 per block (~8 MiB on 128-MiB parts, ~4 MiB on v7x);
    tn must divide n and be a multiple of 8 (or equal n).  If batch*n_tiles
    would be 1, halve tn so both v7x TensorCores get a grid step.
    """
    block_budget = max(2 << 20, vmem_cap // 16)
    max_rows = max(1, block_budget // max(1, n * h * 4))
    best = None
    for cand in range(min(n, max_rows), 0, -1):
        if n % cand == 0 and (cand % 8 == 0 or cand == n):
            best = cand
            break
    if best is None:
        # TODO(synk): pathological N (prime, > budget) falls back to a single
        # (1, N, N, H) block; pad N upstream if that ever exceeds scoped VMEM.
        best = n
    if batch * (n // best) < 2 and best % 16 == 0:
        best //= 2
    return best


def fused_edge_encode(dense_chans, dense_thr, dense_w, ptr_vals, ptr_w, bias,
                      *, batch, n, h):
    """One pallas_call producing edge_hidden (B,N,N,H) and the final adjacency."""
    d_e = len(dense_chans)
    n_thr = sum(1 for t in dense_thr if t is not None)
    num_ptr = len(ptr_vals)

    cap = _vmem_capacity_bytes()
    tn = _edge_row_tile(n, h, batch, cap)
    n_tiles = n // tn
    per_row_vregs = (-(-n // 8)) * (-(-h // 128))
    cr = _largest_divisor_leq(tn, max(1, 16 // per_row_vregs))

    inputs, in_specs = [], []
    row_spec = pl.BlockSpec((1, tn, n), lambda b, it: (b, it, 0))
    for x in dense_chans:
        inputs.append(_f32(x))
        in_specs.append(row_spec)
    for x, t in zip(dense_chans, dense_thr):
        if t is not None:
            # TODO(synk): this wrapper-side transpose is one extra (B,N,N) HBM
            # write+read per thresholded channel (<~2% of the edge writeback
            # at H=128); replace with a column BlockSpec + in-kernel transpose
            # once Mosaic transpose of sub-(8,128) f32 tiles is guaranteed.
            inputs.append(jnp.swapaxes(_f32(x), 1, 2))
            in_specs.append(row_spec)
    if num_ptr:
        ptr_rows = jnp.stack([v.astype(jnp.int32) for v in ptr_vals], axis=-1)
        ptr_cols = jnp.swapaxes(ptr_rows, 1, 2)               # tiny int array
        inputs += [ptr_rows, ptr_cols]
        in_specs += [pl.BlockSpec((1, tn, num_ptr), lambda b, it: (b, it, 0)),
                     pl.BlockSpec((1, num_ptr, n), lambda b, it: (b, 0, 0))]
    if d_e:
        inputs.append(_f32(dense_w))                          # (D_e, H)
        in_specs.append(pl.BlockSpec((d_e, h), lambda b, it: (0, 0)))
    if num_ptr:
        inputs.append(_f32(ptr_w))                            # (P, H)
        in_specs.append(pl.BlockSpec((num_ptr, h), lambda b, it: (0, 0)))
    inputs.append(_f32(bias).reshape(1, h))
    in_specs.append(pl.BlockSpec((1, h), lambda b, it: (0, 0)))

    # Scoped VMEM: double-buffered blocks + headroom (explicit for v5e's
    # 16-MiB default; capped below physical for v7x's 64-MiB per-TC VMEM).
    block_bytes = (tn * n * h * 4                      # edge output block
                   + tn * n * 4                        # adjacency output block
                   + (d_e + n_thr) * tn * n * 4        # dense row blocks
                   + num_ptr * (tn + n) * 4            # pointer index blocks
                   + (d_e + num_ptr + 1) * h * 4)      # weights + bias
    vmem_limit = int(min(cap * 0.85,
                         max(32 * 1024 * 1024, 2 * block_bytes + 8 * 1024 * 1024)))

    edge_h, adj = pl.pallas_call(
        _make_edge_kernel(n, h, tn, cr, tuple(dense_thr), num_ptr),
        out_shape=(jax.ShapeDtypeStruct((batch, n, n, h), jnp.float32),
                   jax.ShapeDtypeStruct((batch, n, n), jnp.float32)),
        grid_spec=pltpu.PrefetchScalarGridSpec(
            num_scalar_prefetch=0,
            grid=(batch, n_tiles),
            in_specs=in_specs,
            out_specs=(pl.BlockSpec((1, tn, n, h), lambda b, it: (b, it, 0, 0)),
                       pl.BlockSpec((1, tn, n), lambda b, it: (b, it, 0))),
        ),
        compiler_params=pltpu.CompilerParams(
            dimension_semantics=("parallel", "parallel"),
            vmem_limit_bytes=vmem_limit),
    )(*inputs)
    return edge_h, adj


# ----------------------------------------------------------------------------
# Encoder (JAX / Pallas port of the PyTorch module)
# ----------------------------------------------------------------------------
class _Groups:
    def __init__(self):
        self.node_x, self.node_w, self.node_b = [], [], []
        self.graph_x, self.graph_w, self.graph_b = [], [], []
        self.dense_x, self.dense_w, self.dense_t = [], [], []
        self.ptr_x, self.ptr_w = [], []
        self.edge_b, self.edge_extra = [], []


class EncoderPallas:
    def __init__(self, algorithm, encode_hints=True, soft_hints=True,
                 hidden_dim=128, key=jax.random.PRNGKey(0)):
        self.hidden_dim = hidden_dim
        self.algorithm = algorithm
        self.encode_hints = encode_hints
        self.soft_hint = soft_hints
        self.specs = SPECS[algorithm]
        self.params = {}

        def make_linear(name, input_dim):
            nonlocal key
            key, wk, bk = jax.random.split(key, 3)
            scale = (2.0 / (input_dim + hidden_dim)) ** 0.5      # xavier-normal-like
            w = scale * jax.random.normal(wk, (input_dim, hidden_dim), jnp.float32)
            b = 0.1 * jax.random.normal(bk, (hidden_dim,), jnp.float32)
            self.params[name] = (w, b)

        for k, (stage, loc, type_) in self.specs.items():
            if stage == Stage.OUTPUT:
                continue
            input_dim = 1
            if type_ == Type.CATEGORICAL:
                input_dim = CATEGORIES_DIMENSIONS[algorithm][k]
            make_linear(k, input_dim)
            if loc == Location.EDGE and type_ == Type.POINTER:
                make_linear(k + "_2", input_dim)

    # ------------------------------------------------------------------
    def _collect(self, data, nb_nodes, hint_step, g):
        """Route every feature into its fused destination group (trace-time)."""
        for k, value in data.items():
            if k not in self.specs:
                continue
            _, loc, type_ = self.specs[k]
            if hint_step is not None:
                value = value[:, hint_step]
            hard = (not self.soft_hint) or (hint_step is None)
            w, b = self.params[k]

            if (loc == Location.NODE and type_ != Type.POINTER) or \
               (loc == Location.GRAPH and type_ == Type.POINTER):
                if type_ == Type.CATEGORICAL:
                    x = _f32(value)
                elif type_ == Type.POINTER and hard:
                    x = jax.nn.one_hot(value.astype(jnp.int32), nb_nodes,
                                       dtype=jnp.float32)[..., None]
                else:
                    x = _f32(value)[..., None]
                g.node_x.append(x); g.node_w.append(w); g.node_b.append(b)

            elif loc == Location.EDGE and type_ == Type.POINTER:
                # Mean-pooled pointer edge features: per-feature Pallas linears
                # + plain-JAX means (not in the toy spec).
                # TODO(synk): fold the pooled (B,N,N,H) extras into the fused
                # edge kernel as broadcast-add inputs; soft-hint variant of
                # this branch has ambiguous broadcast semantics upstream.
                if hard:
                    x = jax.nn.one_hot(value.astype(jnp.int32), nb_nodes,
                                       dtype=jnp.float32)[..., None]
                else:
                    x = _f32(value)[..., None]
                w2, b2 = self.params[k + "_2"]
                enc1 = pallas_linear(x, w, b)
                enc2 = pallas_linear(x, w2, b2)
                g.edge_extra.append(jnp.mean(enc1, axis=1) + jnp.mean(enc2, axis=2))

            elif loc == Location.EDGE or (loc == Location.NODE and type_ == Type.POINTER):
                g.edge_b.append(b)
                if loc == Location.NODE and type_ == Type.POINTER and hard:
                    # Keep raw indices; the one-hot is built in-kernel.
                    g.ptr_x.append(value.astype(jnp.int32))
                    g.ptr_w.append(w)
                elif type_ == Type.CATEGORICAL:
                    xv = _f32(value)
                    for c in range(xv.shape[-1]):
                        g.dense_x.append(xv[..., c])
                        g.dense_w.append(w[c:c + 1])
                        g.dense_t.append(None)
                else:
                    g.dense_x.append(_f32(value))
                    g.dense_w.append(w[0:1])
                    if loc == Location.EDGE and type_ == Type.MASK:
                        g.dense_t.append(0.0)
                    elif loc == Location.NODE and type_ == Type.POINTER:
                        g.dense_t.append(0.5)            # soft pointer hint
                    else:
                        g.dense_t.append(None)

            elif loc == Location.GRAPH and type_ != Type.POINTER:
                x = _f32(value) if type_ == Type.CATEGORICAL else _f32(value)[..., None]
                g.graph_x.append(x); g.graph_w.append(w); g.graph_b.append(b)

    # ------------------------------------------------------------------
    def forward(self, inputs, nb_nodes, batch_size, hints=None, hint_step=None):
        h = self.hidden_dim
        g = _Groups()
        self._collect(inputs, nb_nodes, None, g)
        if self.encode_hints and hints is not None:
            self._collect(hints, nb_nodes, hint_step, g)

        # ---- node_hidden: one fused linear over every node-destined feature --
        if g.node_x:
            node_h = pallas_linear(jnp.concatenate(g.node_x, axis=-1),
                                   jnp.concatenate(g.node_w, axis=0),
                                   sum(g.node_b))
        else:
            node_h = jnp.zeros((batch_size, nb_nodes, h), jnp.float32)

        # ---- graph_hidden ----------------------------------------------------
        if g.graph_x:
            graph_h = pallas_linear(jnp.concatenate(g.graph_x, axis=-1),
                                    jnp.concatenate(g.graph_w, axis=0),
                                    sum(g.graph_b))
        else:
            graph_h = jnp.zeros((batch_size, h), jnp.float32)

        # ---- edge_hidden + adjacency: one fused kernel -----------------------
        if g.dense_x or g.ptr_x:
            edge_h, adj = fused_edge_encode(
                g.dense_x, g.dense_t,
                jnp.concatenate(g.dense_w, axis=0) if g.dense_x else None,
                g.ptr_x,
                jnp.concatenate(g.ptr_w, axis=0) if g.ptr_x else None,
                sum(g.edge_b) if g.edge_b else jnp.zeros((h,), jnp.float32),
                batch=batch_size, n=nb_nodes, h=h)
        else:
            edge_h = jnp.zeros((batch_size, nb_nodes, nb_nodes, h), jnp.float32)
            adj = jnp.broadcast_to(jnp.eye(nb_nodes, dtype=jnp.float32),
                                   (batch_size, nb_nodes, nb_nodes))
        for extra in g.edge_extra:
            edge_h = edge_h + extra

        return node_h, edge_h, graph_h, adj


# ----------------------------------------------------------------------------
# Pure-JAX reference mirroring the original per-feature PyTorch control flow.
# ----------------------------------------------------------------------------
def _ref_preprocess(data, type_, nb_nodes):
    if type_ != Type.CATEGORICAL:
        if type_ == Type.POINTER:
            data = jax.nn.one_hot(data.astype(jnp.int32), nb_nodes,
                                  dtype=jnp.float32)[..., None]
        else:
            data = data[..., None]
    return data.astype(jnp.float32)


def _ref_encode(enc, data, node_h, edge_h, graph_h, adj, nb_nodes, hint_step=None):
    for k, value in data.items():
        if k not in enc.specs:
            continue
        if hint_step is not None:
            value = value[:, hint_step]
        _, loc, type_ = enc.specs[k]
        if (not enc.soft_hint) or hint_step is None:
            _input = _ref_preprocess(value, type_, nb_nodes)
        else:
            _input = (value[..., None] if type_ != Type.CATEGORICAL else value)
            _input = _input.astype(jnp.float32)
        w, b = enc.params[k]
        encoding = jnp.tensordot(_input, w, axes=([-1], [0])) + b
        if (loc == Location.NODE and type_ != Type.POINTER) or \
           (loc == Location.GRAPH and type_ == Type.POINTER):
            node_h = node_h + encoding
        elif loc == Location.EDGE or (loc == Location.NODE and type_ == Type.POINTER):
            if loc == Location.EDGE and type_ == Type.POINTER:
                w2, b2 = enc.params[k + "_2"]
                enc2 = jnp.tensordot(_input, w2, axes=([-1], [0])) + b2
                edge_h = edge_h + jnp.mean(encoding, axis=1) + jnp.mean(enc2, axis=2)
            else:
                edge_h = edge_h + encoding
        elif loc == Location.GRAPH and type_ != Type.POINTER:
            graph_h = graph_h + encoding
        if loc == Location.NODE and type_ == Type.POINTER:
            sq = _input[..., 0]
            adj = adj + ((sq + jnp.swapaxes(sq, 1, 2)) > 0.5).astype(jnp.float32)
        elif loc == Location.EDGE and type_ == Type.MASK:
            sq = _input[..., 0]
            adj = adj + ((sq + jnp.swapaxes(sq, 1, 2)) > 0.0).astype(jnp.float32)
    return node_h, edge_h, graph_h, (adj > 0.0).astype(jnp.float32)


def reference_forward(enc, inputs, nb_nodes, batch_size, hints=None, hint_step=None):
    h = enc.hidden_dim
    node_h = jnp.zeros((batch_size, nb_nodes, h), jnp.float32)
    edge_h = jnp.zeros((batch_size, nb_nodes, nb_nodes, h), jnp.float32)
    graph_h = jnp.zeros((batch_size, h), jnp.float32)
    adj = jnp.broadcast_to(jnp.eye(nb_nodes, dtype=jnp.float32),
                           (batch_size, nb_nodes, nb_nodes))
    node_h, edge_h, graph_h, adj = _ref_encode(
        enc, inputs, node_h, edge_h, graph_h, adj, nb_nodes, None)
    if enc.encode_hints and hints is not None:
        node_h, edge_h, graph_h, adj = _ref_encode(
            enc, hints, node_h, edge_h, graph_h, adj, nb_nodes, hint_step)
    return node_h, edge_h, graph_h, adj


# ----------------------------------------------------------------------------
def _build_example(key, batch, n, t_hints):
    num_cats = CATEGORIES_DIMENSIONS[ALGO]["key"]
    k_pos, k_key, k_pi, k_a, k_s, k_h = jax.random.split(key, 6)
    inputs = {
        "pos": jax.random.uniform(k_pos, (batch, n), jnp.float32),
        "key": jax.nn.one_hot(
            jax.random.randint(k_key, (batch, n), 0, num_cats), num_cats,
            dtype=jnp.float32),
        "pi":  jax.random.randint(k_pi, (batch, n), 0, n),
        "A":   (jax.random.uniform(k_a, (batch, n, n)) > 0.5).astype(jnp.float32),
        "s":   jax.random.uniform(k_s, (batch,), jnp.float32),
    }
    hints = {"h_pos": jax.random.uniform(k_h, (batch, t_hints, n), jnp.float32)}
    return inputs, hints


def _run_config(key, batch, n, hidden, t_hints):
    k_data, k_enc = jax.random.split(key)
    inputs, hints = _build_example(k_data, batch, n, t_hints)

    enc = EncoderPallas(ALGO, encode_hints=True, soft_hints=True,
                        hidden_dim=hidden, key=k_enc)

    node_h, edge_h, graph_h, adj = enc.forward(
        inputs, nb_nodes=n, batch_size=batch, hints=hints, hint_step=1)
    jax.block_until_ready((node_h, edge_h, graph_h, adj))

    # Correctness check against the original per-feature control flow.
    rn, re_, rg, ra = reference_forward(
        enc, inputs, nb_nodes=n, batch_size=batch, hints=hints, hint_step=1)

    assert node_h.shape == (batch, n, hidden)
    assert edge_h.shape == (batch, n, n, hidden)
    assert graph_h.shape == (batch, hidden)
    assert adj.shape == (batch, n, n)
    assert jnp.allclose(node_h, rn, atol=1e-4, rtol=1e-4)
    assert jnp.allclose(edge_h, re_, atol=1e-4, rtol=1e-4)
    assert jnp.allclose(graph_h, rg, atol=1e-4, rtol=1e-4)
    assert jnp.allclose(adj, ra, atol=1e-5)


if __name__ == "__main__":
    root = jax.random.PRNGKey(0)
    k_small, k_big = jax.random.split(root)
    # Tiny config (matches the original toy test).
    _run_config(k_small, batch=2, n=8, hidden=32, t_hints=3)
    # (8,128)-aligned config: validates the tiling / chunking heuristics at a
    # realistic hidden_dim (lane-dense edge stores, MXU linears, chunk loop).
    _run_config(k_big, batch=2, n=64, hidden=128, t_hints=3)
    print("KERNEL_OK")
</pallas_src>

<mosaic_0001>
module attributes {stable_mosaic.version = 11 : i64} {
  func.func @kernel(%arg0: i32, %arg1: memref<16x8xf32, #tpu.memory_space<vmem>>, %arg2: memref<8x128xf32, #tpu.memory_space<vmem>>, %arg3: memref<1x128xf32, #tpu.memory_space<vmem>>, %arg4: memref<16x128xf32, #tpu.memory_space<vmem>>) attributes {dimension_semantics = [#tpu.dimension_semantics<parallel>], iteration_bounds = array<i64: 1>, scalar_prefetch = 0 : i64, scratch_operands = 0 : i64, tpu.core_type = #tpu.core_type<tc>, window_params = [{transform_indices = @transform_0, window_bounds = array<i64: 16, 8>}, {pipeline_mode = #tpu.pipeline_mode<synchronous>, transform_indices = @transform_1, window_bounds = array<i64: 8, 128>}, {pipeline_mode = #tpu.pipeline_mode<synchronous>, transform_indices = @transform_2, window_bounds = array<i64: 1, 128>}, {transform_indices = @transform_3, window_bounds = array<i64: 16, 128>}]} {
    %c0 = arith.constant 0 : index
    %c0_0 = arith.constant 0 : index
    %0 = vector.load %arg2[%c0, %c0_0] : memref<8x128xf32, #tpu.memory_space<vmem>>, vector<8x128xf32>
    %c0_1 = arith.constant 0 : index
    %c0_2 = arith.constant 0 : index
    %1 = vector.load %arg3[%c0_1, %c0_2] : memref<1x128xf32, #tpu.memory_space<vmem>>, vector<1x128xf32>
    %c0_i32 = arith.constant 0 : i32
    %c1_i32 = arith.constant 1 : i32
    %2 = arith.muli %c0_i32, %c1_i32 : i32
    %c0_i32_3 = arith.constant 0 : i32
    %3 = arith.addi %c0_i32_3, %2 : i32
    %c16_i32 = arith.constant 16 : i32
    %4 = arith.muli %3, %c16_i32 : i32
    %5 = tpu.assume_multiple %4, 16 : i32
    %6 = arith.index_cast %5 : i32 to index
    %c0_4 = arith.constant 0 : index
    %7 = vector.load %arg1[%6, %c0_4] : memref<16x8xf32, #tpu.memory_space<vmem>>, vector<16x8xf32>
    %cst = arith.constant dense<0.000000e+00> : vector<16x128xf32>
    %8 = tpu.matmul %7, %0, %cst {dimension_numbers = #tpu.dot_dimension_numbers<[1], [0], [0], [1], [0, 0, 1, 1], [], []>} : vector<16x8xf32>, vector<8x128xf32>, vector<16x128xf32> -> vector<16x128xf32>
    %9 = vector.broadcast %1 : vector<1x128xf32> to vector<16x128xf32>
    %10 = arith.addf %8, %9 : vector<16x128xf32>
    %11 = arith.index_cast %5 : i32 to index
    %c0_5 = arith.constant 0 : index
    %12 = vector.load %arg4[%11, %c0_5] : memref<16x128xf32, #tpu.memory_space<vmem>>, vector<16x128xf32>
    tpu.vector_store %arg4[%11, %c0_5], %10 {strides = array<i32>} : memref<16x128xf32, #tpu.memory_space<vmem>>, vector<16x128xf32>,
    %c1_i32_6 = arith.constant 1 : i32
    return
  }
  func.func @transform_0(%arg0: i32) -> (i32, i32) {
    %c0_i32 = arith.constant 0 : i32
    %c0_i32_0 = arith.constant 0 : i32
    return %arg0, %c0_i32 : i32, i32
  }
  func.func @transform_1(%arg0: i32) -> (i32, i32) {
    %c0_i32 = arith.constant 0 : i32
    %c0_i32_0 = arith.constant 0 : i32
    %c0_i32_1 = arith.constant 0 : i32
    return %c0_i32, %c0_i32_0 : i32, i32
  }
  func.func @transform_2(%arg0: i32) -> (i32, i32) {
    %c0_i32 = arith.constant 0 : i32
    %c0_i32_0 = arith.constant 0 : i32
    %c0_i32_1 = arith.constant 0 : i32
    return %c0_i32, %c0_i32_0 : i32, i32
  }
  func.func @transform_3(%arg0: i32) -> (i32, i32) {
    %c0_i32 = arith.constant 0 : i32
    %c0_i32_0 = arith.constant 0 : i32
    return %arg0, %c0_i32 : i32, i32
  }
}

</mosaic_0001>

<llo_original>
// kernel: tpu_custom_call.1
$region0: #{tpu_custom_call.1}
  #allocation0 [shape = 'u32[]', space=smem, size = 0x4, offset = 0x4, fixed_abs, tag = 'smem constant byte address 0x4 - core index']
  #allocation1 [shape = 'u32[72,128]{1,0:T(1,128)}', space=vmem, size = 0x9000, scoped, tag = 'internal scratch']
  %s0 = inlined_call_operand.vmem [shape: f32[16,8], index: 0, kind: input, shape index: {}]
  %s1 = inlined_call_operand.vmem [shape: f32[8,128], index: 1, kind: input, shape index: {}]
  %s2 = inlined_call_operand.vmem [shape: f32[1,128], index: 2, kind: input, shape index: {}]
  %s3 = inlined_call_operand.hbm [shape: f32[16,128], index: 3, kind: output, shape index: {}]
  %s4 = sld [smem:[#allocation0]]
  $region22: #{tpu_custom_call.1} parent=0
    _
  %s6 = ssub.s32 1, %s4
  %s7 = scalar_select 0, %s6, %s4
  $region1: #{tpu_custom_call.1} parent=0
    #allocation2 [shape = 'u8[8192]{0}', space=vmem, size = 0x2000, scoped, tag = 'output window, operand 0, single buffered']
    #allocation3 [shape = 's32[1]{0}', space=sflag, size = 0x4, scoped, tag = 'scoped memory for tpu_custom_call.1']
    %8 = vsyncpa [#allocation3], 0
    // Predicated region
    $region2: #{tpu_custom_call.1} parent=1 // pred_check
      _
    $region3: #{tpu_custom_call.1} parent=1 // pred_check_branch
      %10 = sbr.rel (0) target = $region5
    $region4: #{tpu_custom_call.1} parent=1 // pred_region
      _
    $region5: #{tpu_custom_call.1} parent=1 // pred_fallthru
      _
    // Predicated region
    $region6: #{tpu_custom_call.1} parent=1 // pred_check
      _
    $region7: #{tpu_custom_call.1} parent=1 // pred_check_branch
      %12 = sbr.rel (0) target = $region9
    $region8: #{tpu_custom_call.1} parent=1 // pred_region
      _
    $region9: #{tpu_custom_call.1} parent=1 // pred_fallthru
      _
    // Predicated region
    $region10: #{tpu_custom_call.1} parent=1 // pred_check
      _
    $region11: #{tpu_custom_call.1} parent=1 // pred_check_branch
      %14 = sbr.rel (0) target = $region13
    $region12: #{tpu_custom_call.1} parent=1 // pred_region
      _
    $region13: #{tpu_custom_call.1} parent=1 // pred_fallthru
      _
    %v15 = vld [vmem:[%s1] sm:$0xff]
    %v16 = vld [vmem:[%s2] sm:$0x1]
    %v17 = vld [vmem:[%s0] sm:$0xff]
    %v18 = vld [vmem:[%s0 + $0x8] sm:$0xff]
    %v20 = vperm.slane %v16, 0
    %vm22 = vcmask 64512
    %v24 = vsel %vm22, %v17, 0
    %v27 = vsel %vm22, %v18, 0
    %29 = vmatpush.msra.mxu0 0.0
    %30 = vmatpush.msra.mxu0 0.0
    %31 = vmatpush.msra.mxu0 0.0
    %32 = vmatpush.msra.mxu0 0.0
    %33 = vmatpush.msra.mxu0 0.0
    %34 = vmatpush.msra.mxu0 0.0
    %35 = vmatpush.msra.mxu0 0.0
    %36 = vmatpush.msra.mxu0 0.0
    %37 = vmatpush.msra.mxu0 0.0
    %38 = vmatpush.msra.mxu0 0.0
    %39 = vmatpush.msra.mxu0 0.0
    %40 = vmatpush.msra.mxu0 0.0
    %41 = vmatpush.msra.mxu0 0.0
    %42 = vmatpush.msra.mxu0 0.0
    %43 = vmatpush.msra.mxu0 0.0
    %44 = vmatpush.msra.mxu0 %v15
    %45 = vmatmul.f32.gmra.mxu0 %v24
    %v46 = vpop.f32.mrf.mxu0
    %v47 = vadd.f32 %v20, %v46
    %48 = vmatmul.f32.gmra.mxu0 %v27
    %v49 = vpop.f32.mrf.mxu0
    %v50 = vadd.f32 %v20, %v49
    %51 = vdwg.mxu0
    %52 = vst [vmem:[#allocation2] sm:$0xff] %v47
    %53 = vst [vmem:[#allocation2 + $0x8] sm:$0xff] %v50
    // Predicated region
    $region14: #{tpu_custom_call.1} parent=1 // pred_check
      _
    $region15: #{tpu_custom_call.1} parent=1 // pred_check_branch
      %55 = sbr.rel (0) target = $region17
    $region16: #{tpu_custom_call.1} parent=1 // pred_region
      %57 = vsyncadd [#allocation3], 0
      %s58 = sshll.u32 [#allocation2], 4
      %s59 = int_to_ptr.vmem [resolvable:$true] %s58
      %s60 = sshll.u32 %s3, 4
      %s61 = int_to_ptr.hbm [resolvable:$true] %s60
      %66 = dma.vmem_to_hbm [thread:$0]  %s59, 256, %s61, [#allocation3], 128, 128, 8
    $region17: #{tpu_custom_call.1} parent=1 // pred_fallthru
      _
    // Predicated region
    $region18: #{tpu_custom_call.1} parent=1 // pred_check
      _
    $region19: #{tpu_custom_call.1} parent=1 // pred_check_branch
      %68 = sbr.rel (0) target = $region21
    $region20: #{tpu_custom_call.1} parent=1 // pred_region
      %70 = dma.done [#allocation3], 256
    $region21: #{tpu_custom_call.1} parent=1 // pred_fallthru
      _
    %71 = vsyncpa [#allocation3], 1

</llo_original>
